<compile_context>
chip_gen: v5e
topology: v5e:2x2
jax: 0.10.0
libtpu: 0.0.40
codegen_flags: <defaults>
</compile_context>

<pallas_src>
import functools

import jax
import jax.numpy as jnp
from jax.experimental import pallas as pl
from jax.experimental.pallas import tpu as pltpu


def _loss_kernel(w_ref, f_ref, r_ref, out_ref, acc_ref, tail_ref,
                 *, w_con, w_spec, width, hw, tc, n_chunks):
    c = pl.program_id(1)

    @pl.when(c == 0)
    def _():
        acc_ref[...] = jnp.zeros_like(acc_ref)

    # d = fused - ref for this (1, tc, H*W) block, accumulated in f32.
    d = f_ref[...].astype(jnp.float32) - r_ref[...].astype(jnp.float32)

    # L1 term (pre-scaled by 1/count).
    acc_ref[...] += jnp.abs(d) * w_con

    # dx term: d[q+1] - d[q] along the flattened H*W axis.  Pairs crossing a row end
    # (q % W == W-1, incl. the circular wrap) have weight 0 in w_ref row 0.
    if hw > 1:
        ddx = pltpu.roll(d, hw - 1, axis=2) - d
        acc_ref[...] += (ddx * ddx) * w_ref[:, 0:1, :]

    # dy term: d[q+W] - d[q]; pairs past the last image row have weight 0 in row 1.
    if width < hw:
        ddy = pltpu.roll(d, hw - width, axis=2) - d
        acc_ref[...] += (ddy * ddy) * w_ref[:, 1:2, :]

    # Spectral-gradient term inside this channel chunk.
    if tc > 1:
        ds = d[:, 1:, :] - d[:, :-1, :]
        acc_ref[:, : tc - 1, :] += (ds * ds) * w_spec

    if n_chunks > 1:
        # Channel pair straddling the previous chunk boundary (carried tail).
        @pl.when(c > 0)
        def _():
            e = d[:, 0:1, :] - tail_ref[...]
            acc_ref[:, 0:1, :] += (e * e) * w_spec

        tail_ref[...] = d[:, tc - 1:tc, :]

    # Epilogue: one sublane reduce per batch; cross-lane reduce done in the wrapper.
    @pl.when(c == n_chunks - 1)
    def _():
        out_ref[...] = jnp.sum(acc_ref[...], axis=1, keepdims=True)


def con_edge_spec_loss(fused, ref, *, block_bytes=1 << 20):
    """Pallas implementation of Con_Edge_Spec_loss.forward (alpha=beta=1)."""
    N, C, H, W = fused.shape
    HW = H * W
    f3 = fused.reshape(N, C, HW)
    r3 = ref.reshape(N, C, HW)

    # 1/count normalizers (degenerate dims guarded against divide-by-zero).
    w_con = 1.0 / float(N * C * H * W)
    w_dx = 1.0 / float(N * C * H * (W - 1)) if W > 1 else 0.0
    w_dy = 1.0 / float(N * C * (H - 1) * W) if H > 1 else 0.0
    w_spec = 1.0 / float(N * (C - 1) * H * W) if C > 1 else 0.0

    # Pre-scaled per-lane weights for dx / dy; boundary pairs get exactly 0.
    q = jnp.arange(HW, dtype=jnp.int32)
    wdx_row = jnp.where((q % W) != (W - 1), w_dx, 0.0).astype(jnp.float32)
    wdy_row = jnp.where(q < (H - 1) * W, w_dy, 0.0).astype(jnp.float32)
    weights = jnp.stack([wdx_row, wdy_row], axis=0).reshape(1, 2, HW)

    # Channel-chunk size: keep each (1, tc, H*W) input block <= ~block_bytes so that
    # 2 inputs x 2 pipeline buffers + f32 accumulator fit scoped VMEM on all chips.
    itemsize = jnp.dtype(fused.dtype).itemsize
    tc = C
    if C * HW * itemsize > block_bytes:
        tc = 1
        for cand in range(C, 0, -1):
            if C % cand == 0 and cand * HW * itemsize <= block_bytes:
                tc = cand
                break
    n_chunks = C // tc

    kernel = functools.partial(
        _loss_kernel,
        w_con=w_con, w_spec=w_spec, width=W, hw=HW, tc=tc, n_chunks=n_chunks)

    partials = pl.pallas_call(
        kernel,
        out_shape=jax.ShapeDtypeStruct((N, 1, HW), jnp.float32),
        grid_spec=pltpu.PrefetchScalarGridSpec(
            num_scalar_prefetch=0,
            grid=(N, n_chunks),
            in_specs=[
                pl.BlockSpec((1, 2, HW), lambda n, c: (0, 0, 0)),     # constant weights
                pl.BlockSpec((1, tc, HW), lambda n, c: (n, c, 0)),    # fused
                pl.BlockSpec((1, tc, HW), lambda n, c: (n, c, 0)),    # ref
            ],
            out_specs=pl.BlockSpec((1, 1, HW), lambda n, c: (n, 0, 0)),
            scratch_shapes=[
                pltpu.VMEM((1, tc, HW), jnp.float32),   # fused element-wise accumulator
                pltpu.VMEM((1, 1, HW), jnp.float32),    # carried last channel (spec halo)
            ],
        ),
        compiler_params=pltpu.CompilerParams(
            dimension_semantics=("parallel", "arbitrary"),
            vmem_limit_bytes=32 * 1024 * 1024,
        ),
    )(weights, f3, r3)

    # Tiny final reduction (N x H*W f32) in plain JAX (also enables parallel batches).
    return jnp.sum(partials)


def _reference_loss(fused, ref):
    """Pure-JAX reference mirroring the PyTorch forward."""
    d = fused - ref
    con = jnp.mean(jnp.abs(d))
    pdx = fused[:, :, :, 1:] - fused[:, :, :, :-1]
    tdx = ref[:, :, :, 1:] - ref[:, :, :, :-1]
    pdy = fused[:, :, 1:, :] - fused[:, :, :-1, :]
    tdy = ref[:, :, 1:, :] - ref[:, :, :-1, :]
    edge = jnp.mean((pdx - tdx) ** 2) + jnp.mean((pdy - tdy) ** 2)
    sf = fused[:, :-1] - fused[:, 1:]
    sr = ref[:, :-1] - ref[:, 1:]
    spec = jnp.mean((sf - sr) ** 2)
    return con + edge + spec


if __name__ == "__main__":
    key = jax.random.PRNGKey(0)
    k1, k2 = jax.random.split(key)
    fused = jax.random.normal(k1, (2, 4, 16, 16), dtype=jnp.float32)
    ref = jax.random.normal(k2, (2, 4, 16, 16), dtype=jnp.float32)

    loss = jax.block_until_ready(con_edge_spec_loss(fused, ref))
    expected = jax.block_until_ready(_reference_loss(fused, ref))
    assert jnp.allclose(loss, expected, rtol=1e-5, atol=1e-5), (loss, expected)
    print("KERNEL_OK")
</pallas_src>

<mosaic_0001>
module attributes {stable_mosaic.version = 11 : i64} {
  func.func @_loss_kernel(%arg0: i32, %arg1: i32, %arg2: memref<1x2x256xf32, #tpu.memory_space<vmem>>, %arg3: memref<1x4x256xf32, #tpu.memory_space<vmem>>, %arg4: memref<1x4x256xf32, #tpu.memory_space<vmem>>, %arg5: memref<1x1x256xf32, #tpu.memory_space<vmem>>, %arg6: memref<1x4x256xf32, #tpu.memory_space<vmem>>, %arg7: memref<1x1x256xf32, #tpu.memory_space<vmem>>) attributes {dimension_semantics = [#tpu.dimension_semantics<parallel>, #tpu.dimension_semantics<arbitrary>], iteration_bounds = array<i64: 2, 1>, scalar_prefetch = 0 : i64, scratch_operands = 2 : i64, tpu.core_type = #tpu.core_type<tc>, window_params = [{pipeline_mode = #tpu.pipeline_mode<synchronous>, transform_indices = @transform_0, window_bounds = array<i64: 1, 2, 256>}, {transform_indices = @transform_1, window_bounds = array<i64: 1, 4, 256>}, {transform_indices = @transform_2, window_bounds = array<i64: 1, 4, 256>}, {transform_indices = @transform_3, window_bounds = array<i64: 1, 1, 256>}]} {
    %c0_i32 = arith.constant 0 : i32
    %0 = arith.cmpi eq, %arg1, %c0_i32 : i32
    %1 = arith.extui %0 : i1 to i32
    %c0_i32_0 = arith.constant 0 : i32
    %2 = arith.cmpi ne, %1, %c0_i32_0 : i32
    scf.if %2 {
      %cst_38 = arith.constant 0.000000e+00 : f32
      %42 = vector.broadcast %cst_38 : f32 to vector<1x4x256xf32>
      %c0_39 = arith.constant 0 : index
      %c0_40 = arith.constant 0 : index
      %c0_41 = arith.constant 0 : index
      %43 = vector.load %arg6[%c0_39, %c0_40, %c0_41] : memref<1x4x256xf32, #tpu.memory_space<vmem>>, vector<1x4x256xf32>
      tpu.vector_store %arg6[%c0_39, %c0_40, %c0_41], %42 {strides = array<i32>} : memref<1x4x256xf32, #tpu.memory_space<vmem>>, vector<1x4x256xf32>,
    } else {
    }
    %c0 = arith.constant 0 : index
    %c0_1 = arith.constant 0 : index
    %c0_2 = arith.constant 0 : index
    %3 = vector.load %arg3[%c0, %c0_1, %c0_2] : memref<1x4x256xf32, #tpu.memory_space<vmem>>, vector<1x4x256xf32>
    %c0_3 = arith.constant 0 : index
    %c0_4 = arith.constant 0 : index
    %c0_5 = arith.constant 0 : index
    %4 = vector.load %arg4[%c0_3, %c0_4, %c0_5] : memref<1x4x256xf32, #tpu.memory_space<vmem>>, vector<1x4x256xf32>
    %5 = arith.subf %3, %4 : vector<1x4x256xf32>
    %c0_6 = arith.constant 0 : index
    %c0_7 = arith.constant 0 : index
    %c0_8 = arith.constant 0 : index
    %6 = vector.load %arg6[%c0_6, %c0_7, %c0_8] : memref<1x4x256xf32, #tpu.memory_space<vmem>>, vector<1x4x256xf32>
    %7 = math.absf %5 : vector<1x4x256xf32>
    %cst = arith.constant 4.8828125E-4 : f32
    %8 = vector.broadcast %cst : f32 to vector<1x4x256xf32>
    %9 = arith.mulf %7, %8 : vector<1x4x256xf32>
    %10 = arith.addf %6, %9 : vector<1x4x256xf32>
    %c0_9 = arith.constant 0 : index
    %c0_10 = arith.constant 0 : index
    %c0_11 = arith.constant 0 : index
    %11 = vector.load %arg6[%c0_9, %c0_10, %c0_11] : memref<1x4x256xf32, #tpu.memory_space<vmem>>, vector<1x4x256xf32>
    tpu.vector_store %arg6[%c0_9, %c0_10, %c0_11], %10 {strides = array<i32>} : memref<1x4x256xf32, #tpu.memory_space<vmem>>, vector<1x4x256xf32>,
    %c255_i32 = arith.constant 255 : i32
    %12 = tpu.dynamic_rotate %5 by %c255_i32 dim 2 : vector<1x4x256xf32>, i32 -> vector<1x4x256xf32>
    %13 = arith.subf %12, %5 : vector<1x4x256xf32>
    %c0_12 = arith.constant 0 : index
    %c0_13 = arith.constant 0 : index
    %c0_14 = arith.constant 0 : index
    %14 = vector.load %arg6[%c0_12, %c0_13, %c0_14] : memref<1x4x256xf32, #tpu.memory_space<vmem>>, vector<1x4x256xf32>
    %15 = arith.mulf %13, %13 : vector<1x4x256xf32>
    %c0_15 = arith.constant 0 : index
    %c0_16 = arith.constant 0 : index
    %c0_17 = arith.constant 0 : index
    %16 = vector.load %arg2[%c0_15, %c0_16, %c0_17] : memref<1x2x256xf32, #tpu.memory_space<vmem>>, vector<1x1x256xf32>
    %17 = vector.broadcast %16 : vector<1x1x256xf32> to vector<1x4x256xf32>
    %18 = arith.mulf %15, %17 : vector<1x4x256xf32>
    %19 = arith.addf %14, %18 : vector<1x4x256xf32>
    %c0_18 = arith.constant 0 : index
    %c0_19 = arith.constant 0 : index
    %c0_20 = arith.constant 0 : index
    %20 = vector.load %arg6[%c0_18, %c0_19, %c0_20] : memref<1x4x256xf32, #tpu.memory_space<vmem>>, vector<1x4x256xf32>
    tpu.vector_store %arg6[%c0_18, %c0_19, %c0_20], %19 {strides = array<i32>} : memref<1x4x256xf32, #tpu.memory_space<vmem>>, vector<1x4x256xf32>,
    %c240_i32 = arith.constant 240 : i32
    %21 = tpu.dynamic_rotate %5 by %c240_i32 dim 2 : vector<1x4x256xf32>, i32 -> vector<1x4x256xf32>
    %22 = arith.subf %21, %5 : vector<1x4x256xf32>
    %c0_21 = arith.constant 0 : index
    %c0_22 = arith.constant 0 : index
    %c0_23 = arith.constant 0 : index
    %23 = vector.load %arg6[%c0_21, %c0_22, %c0_23] : memref<1x4x256xf32, #tpu.memory_space<vmem>>, vector<1x4x256xf32>
    %24 = arith.mulf %22, %22 : vector<1x4x256xf32>
    %c0_24 = arith.constant 0 : index
    %c1 = arith.constant 1 : index
    %c0_25 = arith.constant 0 : index
    %25 = vector.load %arg2[%c0_24, %c1, %c0_25] : memref<1x2x256xf32, #tpu.memory_space<vmem>>, vector<1x1x256xf32>
    %26 = vector.broadcast %25 : vector<1x1x256xf32> to vector<1x4x256xf32>
    %27 = arith.mulf %24, %26 : vector<1x4x256xf32>
    %28 = arith.addf %23, %27 : vector<1x4x256xf32>
    %c0_26 = arith.constant 0 : index
    %c0_27 = arith.constant 0 : index
    %c0_28 = arith.constant 0 : index
    %29 = vector.load %arg6[%c0_26, %c0_27, %c0_28] : memref<1x4x256xf32, #tpu.memory_space<vmem>>, vector<1x4x256xf32>
    tpu.vector_store %arg6[%c0_26, %c0_27, %c0_28], %28 {strides = array<i32>} : memref<1x4x256xf32, #tpu.memory_space<vmem>>, vector<1x4x256xf32>,
    %30 = vector.extract_strided_slice %5 {offsets = [0, 1, 0], sizes = [1, 3, 256], strides = [1, 1, 1]} : vector<1x4x256xf32> to vector<1x3x256xf32>
    %31 = vector.extract_strided_slice %5 {offsets = [0, 0, 0], sizes = [1, 3, 256], strides = [1, 1, 1]} : vector<1x4x256xf32> to vector<1x3x256xf32>
    %32 = arith.subf %30, %31 : vector<1x3x256xf32>
    %c0_29 = arith.constant 0 : index
    %c0_30 = arith.constant 0 : index
    %c0_31 = arith.constant 0 : index
    %33 = vector.load %arg6[%c0_29, %c0_30, %c0_31] : memref<1x4x256xf32, #tpu.memory_space<vmem>>, vector<1x3x256xf32>
    %34 = arith.mulf %32, %32 : vector<1x3x256xf32>
    %cst_32 = arith.constant 6.51041686E-4 : f32
    %35 = vector.broadcast %cst_32 : f32 to vector<1x3x256xf32>
    %36 = arith.mulf %34, %35 : vector<1x3x256xf32>
    %37 = arith.addf %33, %36 : vector<1x3x256xf32>
    %c0_33 = arith.constant 0 : index
    %c0_34 = arith.constant 0 : index
    %c0_35 = arith.constant 0 : index
    %38 = vector.load %arg6[%c0_33, %c0_34, %c0_35] : memref<1x4x256xf32, #tpu.memory_space<vmem>>, vector<1x3x256xf32>
    tpu.vector_store %arg6[%c0_33, %c0_34, %c0_35], %37 {strides = array<i32>} : memref<1x4x256xf32, #tpu.memory_space<vmem>>, vector<1x3x256xf32>,
    %c0_i32_36 = arith.constant 0 : i32
    %39 = arith.cmpi eq, %arg1, %c0_i32_36 : i32
    %40 = arith.extui %39 : i1 to i32
    %c0_i32_37 = arith.constant 0 : i32
    %41 = arith.cmpi ne, %40, %c0_i32_37 : i32
    scf.if %41 {
      %c0_38 = arith.constant 0 : index
      %c0_39 = arith.constant 0 : index
      %c0_40 = arith.constant 0 : index
      %42 = vector.load %arg6[%c0_38, %c0_39, %c0_40] : memref<1x4x256xf32, #tpu.memory_space<vmem>>, vector<1x4x256xf32>
      %cst_41 = arith.constant dense<0.000000e+00> : vector<1x256xf32>
      %43 = vector.multi_reduction <add>, %42, %cst_41 [1] : vector<1x4x256xf32> to vector<1x256xf32>
      %44 = vector.shape_cast %43 : vector<1x256xf32> to vector<1x1x256xf32>
      %c0_42 = arith.constant 0 : index
      %c0_43 = arith.constant 0 : index
      %c0_44 = arith.constant 0 : index
      %45 = vector.load %arg5[%c0_42, %c0_43, %c0_44] : memref<1x1x256xf32, #tpu.memory_space<vmem>>, vector<1x1x256xf32>
      tpu.vector_store %arg5[%c0_42, %c0_43, %c0_44], %44 {strides = array<i32>} : memref<1x1x256xf32, #tpu.memory_space<vmem>>, vector<1x1x256xf32>,
    } else {
    }
    return
  }
  func.func @transform_0(%arg0: i32, %arg1: i32) -> (i32, i32, i32) {
    %c0_i32 = arith.constant 0 : i32
    %c0_i32_0 = arith.constant 0 : i32
    %c0_i32_1 = arith.constant 0 : i32
    %c0_i32_2 = arith.constant 0 : i32
    return %c0_i32, %c0_i32_0, %c0_i32_1 : i32, i32, i32
  }
  func.func @transform_1(%arg0: i32, %arg1: i32) -> (i32, i32, i32) {
    %c0_i32 = arith.constant 0 : i32
    %c0_i32_0 = arith.constant 0 : i32
    return %arg0, %arg1, %c0_i32 : i32, i32, i32
  }
  func.func @transform_2(%arg0: i32, %arg1: i32) -> (i32, i32, i32) {
    %c0_i32 = arith.constant 0 : i32
    %c0_i32_0 = arith.constant 0 : i32
    return %arg0, %arg1, %c0_i32 : i32, i32, i32
  }
  func.func @transform_3(%arg0: i32, %arg1: i32) -> (i32, i32, i32) {
    %c0_i32 = arith.constant 0 : i32
    %c0_i32_0 = arith.constant 0 : i32
    %c0_i32_1 = arith.constant 0 : i32
    return %arg0, %c0_i32, %c0_i32_0 : i32, i32, i32
  }
}

</mosaic_0001>

<llo_original>
// kernel: tpu_custom_call.1
$region0: #{tpu_custom_call.1}
  #allocation0 [shape = 'u32[]', space=smem, size = 0x4, offset = 0x4, fixed_abs, tag = 'smem constant byte address 0x4 - core index']
  #allocation1 [shape = 'u32[72,128]{1,0:T(1,128)}', space=vmem, size = 0x9000, scoped, tag = 'internal scratch']
  #allocation2 [shape = 'f32[1,4,256]{2,1,0:T(4,128)}', space=vmem, size = 0x1000, scoped, tag = 'scratch operand']
  #allocation3 [shape = 'f32[1,1,256]{2,1,0:T(1,128)}', space=vmem, size = 0x400, scoped, tag = 'scratch operand']
  %s0 = inlined_call_operand.hbm [shape: f32[1,2,256], index: 0, kind: input, shape index: {}]
  %s1 = inlined_call_operand.hbm [shape: f32[2,4,256], index: 1, kind: input, shape index: {}]
  %s2 = inlined_call_operand.hbm [shape: f32[2,4,256], index: 2, kind: input, shape index: {}]
  %s3 = inlined_call_operand.hbm [shape: f32[2,1,256], index: 3, kind: output, shape index: {}]
  %s4 = sld [smem:[#allocation0]]
  $region65: #{tpu_custom_call.1} parent=0
    _
  %s6 = ssub.s32 1, %s4
  %s7 = scalar_select 0, %s6, %s4
  $region1: #{tpu_custom_call.1} parent=0
    #allocation4 [shape = 'u8[2048]{0}', space=vmem, size = 0x800, scoped, tag = 'input window, operand 0, single buffered']
    #allocation5 [shape = 's32[2]{0}', space=sflag, size = 0x8, scoped, tag = 'scoped memory for tpu_custom_call.1']
    #allocation6 [shape = 's32[2]{0}', space=sflag, size = 0x8, scoped, tag = 'scoped memory for tpu_custom_call.1']
    #allocation7 [shape = 'u8[8192]{0}', space=vmem, size = 0x2000, scoped, tag = 'input window, operand 1']
    #allocation8 [shape = 's32[2]{0}', space=sflag, size = 0x8, scoped, tag = 'scoped memory for tpu_custom_call.1']
    #allocation9 [shape = 'u8[8192]{0}', space=vmem, size = 0x2000, scoped, tag = 'input window, operand 2']
    #allocation10 [shape = 'u8[2048]{0}', space=vmem, size = 0x800, scoped, tag = 'output window, operand 0']
    %8 = vsyncpa [#allocation5], 0
    %9 = vsyncpa [#allocation8], 0
    %s10 = scalar_lea.sflag [#allocation8], 1
    %11 = vsyncpa %s10, 0
    %12 = vsyncpa [#allocation6], 0
    %s13 = scalar_lea.sflag [#allocation6], 1
    %14 = vsyncpa %s13, 0
    loop: start=0, step=1, limit=4
    $region2: #{tpu_custom_call.1} parent=1 // loop_pre_header
      _
    $region3: #{tpu_custom_call.1} parent=1 // loop_header
      %s16 = sphi 0, %s20
      %p17 = scmp.ge.s32.totalorder %s16, 4
      %s23 = sphi 0, %s35
      %s24 = sphi 0, %s31
      %s25 = sphi 0, %s23
      %s26 = sphi 0, %s24
      %s27 = sphi 0, %s25
      %s28 = sphi 0, %s26
      %s36 = sphi 0, %s36
      %s38 = sphi 0, %s36
      %s39 = sphi 0, %s38
      %s53 = sphi 0, %s39
      %s61 = sphi 0, %s63
      %s64 = sphi 0, %s61
      %s65 = sphi 0, %s64
      %s81 = sphi 0, %s65
      %s89 = sphi 0, %s91
      %s92 = sphi 0, %s89
      %s93 = sphi 0, %s92
      %s109 = sphi 0, %s93
      %s115 = sphi 0, %s117
      %s118 = sphi 0, %s115
      %s119 = sphi 0, %s118
      %s135 = sphi 0, %s119
    $region4: #{tpu_custom_call.1} parent=1 // loop_header_branch
      %19 = sbr.rel (%p17) target = $region8
    $region5: #{tpu_custom_call.1} parent=1 // loop_body
      %s21 = ssub.s32 %s16, 1
      %s22 = ssub.s32 %s16, 2
      %s29 = sadd.s32 1, %s24
      %p30 = scmp.ge.s32.totalorder %s29, 1
      %s31 = scalar_select %p30, 0, %s29
      %s32 = sadd.s32 1, %s23
      %s33 = scalar_select %p30, %s32, %s23
      %p34 = scmp.ge.s32.totalorder %s33, 2
      %s35 = scalar_select %p34, 0, %s33
      %s37 = sadd.s32 %s36, 1
      %p40 = scmp.eq.s32.totalorder %s16, 1
      %p41 = scmp.ne.s32.totalorder %s36, %s38
      %p42 = scmp.eq.s32.totalorder %s16, 0
      %p43 = por %p41, %p42
      %p44 = scmp.ne.s32.totalorder %s36, %s38
      %p45 = scmp.eq.s32.totalorder %s21, 1
      %p46 = por %p44, %p45
      %p47 = scmp.ne.s32.totalorder %s38, %s39
      %p48 = scmp.eq.s32.totalorder %s21, 0
      %p49 = por %p47, %p48
      %p50 = scmp.ne.s32.totalorder %s38, %s39
      %p51 = scmp.eq.s32.totalorder %s22, 1
      %p52 = por %p50, %p51
      %p54 = scmp.ne.s32.totalorder %s39, %s53
      %p55 = scmp.eq.s32.totalorder %s22, 0
      %p56 = por %p54, %p55
      %s57 = ssub.s32 %s23, %s35
      %s58 = ssub.s32 %s24, %s31
      %s59 = sor.u32 %s57, %s58
      %p60 = scmp.eq.s32.totalorder %s59, 0
      %s62 = sadd.s32 %s61, 1
      %s63 = scalar_select %p60, %s61, %s62
      %p66 = pneg %p60
      %p67 = scmp.eq.s32.totalorder %s16, 1
      %p68 = por %p66, %p67
      %p69 = scmp.ne.s32.totalorder %s61, %s64
      %p70 = scmp.eq.s32.totalorder %s16, 0
      %p71 = por %p69, %p70
      %p72 = scmp.ne.s32.totalorder %s61, %s64
      %p73 = scmp.eq.s32.totalorder %s21, 1
      %p74 = por %p72, %p73
      %p75 = scmp.ne.s32.totalorder %s64, %s65
      %p76 = scmp.eq.s32.totalorder %s21, 0
      %p77 = por %p75, %p76
      %p78 = scmp.ne.s32.totalorder %s64, %s65
      %p79 = scmp.eq.s32.totalorder %s22, 1
      %p80 = por %p78, %p79
      %p82 = scmp.ne.s32.totalorder %s65, %s81
      %p83 = scmp.eq.s32.totalorder %s22, 0
      %p84 = por %p82, %p83
      %s85 = ssub.s32 %s23, %s35
      %s86 = ssub.s32 %s24, %s31
      %s87 = sor.u32 %s85, %s86
      %p88 = scmp.eq.s32.totalorder %s87, 0
      %s90 = sadd.s32 %s89, 1
      %s91 = scalar_select %p88, %s89, %s90
      %p94 = pneg %p88
      %p95 = scmp.eq.s32.totalorder %s16, 1
      %p96 = por %p94, %p95
      %p97 = scmp.ne.s32.totalorder %s89, %s92
      %p98 = scmp.eq.s32.totalorder %s16, 0
      %p99 = por %p97, %p98
      %p100 = scmp.ne.s32.totalorder %s89, %s92
      %p101 = scmp.eq.s32.totalorder %s21, 1
      %p102 = por %p100, %p101
      %p103 = scmp.ne.s32.totalorder %s92, %s93
      %p104 = scmp.eq.s32.totalorder %s21, 0
      %p105 = por %p103, %p104
      %p106 = scmp.ne.s32.totalorder %s92, %s93
      %p107 = scmp.eq.s32.totalorder %s22, 1
      %p108 = por %p106, %p107
      %p110 = scmp.ne.s32.totalorder %s93, %s109
      %p111 = scmp.eq.s32.totalorder %s22, 0
      %p112 = por %p110, %p111
      %s113 = ssub.s32 %s23, %s35
      %p114 = scmp.eq.s32.totalorder %s113, 0
      %s116 = sadd.s32 %s115, 1
      %s117 = scalar_select %p114, %s115, %s116
      %p120 = pneg %p114
      %p121 = scmp.eq.s32.totalorder %s16, 1
      %p122 = por %p120, %p121
      %p123 = scmp.ne.s32.totalorder %s115, %s118
      %p124 = scmp.eq.s32.totalorder %s16, 0
      %p125 = por %p123, %p124
      %p126 = scmp.ne.s32.totalorder %s115, %s118
      %p127 = scmp.eq.s32.totalorder %s21, 1
      %p128 = por %p126, %p127
      %p129 = scmp.ne.s32.totalorder %s118, %s119
      %p130 = scmp.eq.s32.totalorder %s21, 0
      %p131 = por %p129, %p130
      %p132 = scmp.ne.s32.totalorder %s118, %s119
      %p133 = scmp.eq.s32.totalorder %s22, 1
      %p134 = por %p132, %p133
      %p136 = scmp.ne.s32.totalorder %s119, %s135
      %p137 = scmp.eq.s32.totalorder %s22, 0
      %p138 = por %p136, %p137
      %p139 = scmp.le.s32.totalorder 1, %s16
      %p140 = scmp.lt.s32.totalorder %s16, 3
      %p141 = pnand %p139, %p140
      %p142 = pneg %p141
      // Predicated region
      $region9: #{tpu_custom_call.1} parent=5 // pred_check
        _
      $region10: #{tpu_custom_call.1} parent=5 // pred_check_branch
        %144 = sbr.rel (%p141) target = $region12
      $region11: #{tpu_custom_call.1} parent=5 // pred_region
        %s145 = ssub.s32 %s16, 1
        // Predicated region
        $region13: #{tpu_custom_call.1} parent=11 // pred_check
          %p146 = pneg %p49
        $region14: #{tpu_custom_call.1} parent=11 // pred_check_branch
          %148 = sbr.rel (%p146) target = $region16
        $region15: #{tpu_custom_call.1} parent=11 // pred_region
          %150 = vsyncadd [#allocation5], 0
          %s152 = sshll.u32 %s0, 4
          %s153 = int_to_ptr.hbm [resolvable:$true] %s152
          %s154 = sshll.u32 [#allocation4], 4
          %s155 = int_to_ptr.vmem [resolvable:$true] %s154
          %157 = dma.hbm_to_vmem [thread:$0]  %s153, 64, %s155, [#allocation5]
        $region16: #{tpu_custom_call.1} parent=11 // pred_fallthru
          _
      $region12: #{tpu_custom_call.1} parent=5 // pred_fallthru
        _
      %p158 = scmp.lt.s32.totalorder %s16, 2
      // Predicated region
      $region17: #{tpu_custom_call.1} parent=5 // pred_check
        %p159 = pneg %p158
      $region18: #{tpu_custom_call.1} parent=5 // pred_check_branch
        %161 = sbr.rel (%p159) target = $region20
      $region19: #{tpu_custom_call.1} parent=5 // pred_region
        // Predicated region
        $region21: #{tpu_custom_call.1} parent=19 // pred_check
          %p162 = pneg %p71
        $region22: #{tpu_custom_call.1} parent=19 // pred_check_branch
          %164 = sbr.rel (%p162) target = $region24
        $region23: #{tpu_custom_call.1} parent=19 // pred_region
          %s165 = sand.u32 %s16, 1
          %s166 = scalar_lea.sflag [#allocation8], %s165
          %s167 = sand.u32 %s61, 1
          %s168 = smul.addr %s167, 8
          %s169 = scalar_lea.vmem [#allocation7], %s168
          %171 = vsyncadd %s166, 0
          %s172 = smul.addr %s24, 2
          %s173 = smul.addr %s23, 2
          %s174 = sadd.s32 %s172, %s173
          %s175 = smul.addr %s174, 4
          %s176 = scalar_lea.hbm %s1, %s175
          %s178 = sshll.u32 %s176, 4
          %s179 = int_to_ptr.hbm [resolvable:$true] %s178
          %s180 = sshll.u32 %s169, 4
          %s181 = int_to_ptr.vmem [resolvable:$true] %s180
          %183 = dma.hbm_to_vmem [thread:$0]  %s179, 128, %s181, %s166
        $region24: #{tpu_custom_call.1} parent=19 // pred_fallthru
          _
        // Predicated region
        $region25: #{tpu_custom_call.1} parent=19 // pred_check
          %p184 = pneg %p99
        $region26: #{tpu_custom_call.1} parent=19 // pred_check_branch
          %186 = sbr.rel (%p184) target = $region28
        $region27: #{tpu_custom_call.1} parent=19 // pred_region
          %s187 = sand.u32 %s16, 1
          %s188 = scalar_lea.sflag [#allocation8], %s187
          %s189 = sand.u32 %s89, 1
          %s190 = smul.addr %s189, 8
          %s191 = scalar_lea.vmem [#allocation9], %s190
          %193 = vsyncadd %s188, 0
          %s194 = smul.addr %s24, 2
          %s195 = smul.addr %s23, 2
          %s196 = sadd.s32 %s194, %s195
          %s197 = smul.addr %s196, 4
          %s198 = scalar_lea.hbm %s2, %s197
          %s200 = sshll.u32 %s198, 4
          %s201 = int_to_ptr.hbm [resolvable:$true] %s200
          %s202 = sshll.u32 %s191, 4
          %s203 = int_to_ptr.vmem [resolvable:$true] %s202
          %205 = dma.hbm_to_vmem [thread:$0]  %s201, 128, %s203, %s188
        $region28: #{tpu_custom_call.1} parent=19 // pred_fallthru
          _
      $region20: #{tpu_custom_call.1} parent=5 // pred_fallthru
        _
      %p206 = scmp.le.s32.totalorder 1, %s16
      %p207 = scmp.lt.s32.totalorder %s16, 3
      %p208 = pnand %p206, %p207
      %p209 = pneg %p208
      // Predicated region
      $region29: #{tpu_custom_call.1} parent=5 // pred_check
        _
      $region30: #{tpu_custom_call.1} parent=5 // pred_check_branch
        %211 = sbr.rel (%p208) target = $region32
      $region31: #{tpu_custom_call.1} parent=5 // pred_region
        %s212 = ssub.s32 %s16, 1
        // Predicated region
        $region33: #{tpu_custom_call.1} parent=31 // pred_check
          %p213 = pneg %p49
        $region34: #{tpu_custom_call.1} parent=31 // pred_check_branch
          %215 = sbr.rel (%p213) target = $region36
        $region35: #{tpu_custom_call.1} parent=31 // pred_region
          %217 = dma.done [#allocation5], 64
        $region36: #{tpu_custom_call.1} parent=31 // pred_fallthru
          _
        %s218 = sand.u32 %s21, 1
        %s219 = scalar_lea.sflag [#allocation8], %s218
        %s220 = sand.u32 %s64, 1
        %s221 = smul.addr %s220, 8
        %s222 = scalar_lea.vmem [#allocation7], %s221
        // Predicated region
        $region37: #{tpu_custom_call.1} parent=31 // pred_check
          %p223 = pneg %p77
        $region38: #{tpu_custom_call.1} parent=31 // pred_check_branch
          %225 = sbr.rel (%p223) target = $region40
        $region39: #{tpu_custom_call.1} parent=31 // pred_region
          %227 = dma.done %s219, 128
        $region40: #{tpu_custom_call.1} parent=31 // pred_fallthru
          _
        %s228 = sand.u32 %s21, 1
        %s229 = scalar_lea.sflag [#allocation8], %s228
        %s230 = sand.u32 %s92, 1
        %s231 = smul.addr %s230, 8
        %s232 = scalar_lea.vmem [#allocation9], %s231
        // Predicated region
        $region41: #{tpu_custom_call.1} parent=31 // pred_check
          %p233 = pneg %p105
        $region42: #{tpu_custom_call.1} parent=31 // pred_check_branch
          %235 = sbr.rel (%p233) target = $region44
        $region43: #{tpu_custom_call.1} parent=31 // pred_region
          %237 = dma.done %s229, 128
        $region44: #{tpu_custom_call.1} parent=31 // pred_fallthru
          _
        %p238 = pneg %p49
        %p239 = pneg %p46
        %s240 = sand.u32 %s21, 1
        %s241 = scalar_lea.sflag [#allocation8], %s240
        %s242 = sand.u32 %s64, 1
        %s243 = smul.addr %s242, 8
        %s244 = scalar_lea.vmem [#allocation7], %s243
        %p245 = pneg %p77
        %p246 = pneg %p74
        %s247 = sand.u32 %s21, 1
        %s248 = scalar_lea.sflag [#allocation8], %s247
        %s249 = sand.u32 %s92, 1
        %s250 = smul.addr %s249, 8
        %s251 = scalar_lea.vmem [#allocation9], %s250
        %p252 = pneg %p105
        %p253 = pneg %p102
        %p254 = pneg %p131
        %p255 = pneg %p128
        %s256 = sand.u32 %s118, 1
        %s257 = scalar_lea.sflag [#allocation6], %s256
        %s258 = sand.u32 %s118, 1
        %s259 = smul.addr %s258, 2
        %s260 = scalar_lea.vmem [#allocation10], %s259
        %p261 = scmp.eq.s32.totalorder %s26, 0
        // Predicated region
        $region45: #{tpu_custom_call.1} parent=31 // pred_check
          %p262 = pneg %p261
        $region46: #{tpu_custom_call.1} parent=31 // pred_check_branch
          %264 = sbr.rel (%p262) target = $region48
        $region47: #{tpu_custom_call.1} parent=31 // pred_region
          %265 = vst [vmem:[#allocation2] sm:$0xff] 0.0
        $region48: #{tpu_custom_call.1} parent=31 // pred_fallthru
          _
        %v266 = vld [vmem:[%s222] sm:$0xff]
        %v267 = vld [vmem:[%s232] sm:$0xff]
        %v268 = vsub.f32 %v266, %v267
        %v269 = vld [vmem:[#allocation2] sm:$0xff]
        %v270 = vand.u32 2147483647, %v268
        %v271 = vmul.f32 %v270, 0.00048828125
        %v272 = vadd.f32 %v269, %v271
        %273 = vst [vmem:[#allocation2] sm:$0xff] %v272
        %275 = vst [vmem:[#allocation1] ss:$2 sm:$0xff] %v268
        %v276 = vld.sshfl [vmem:[#allocation1] sm:$0xff pattern:$0x75316420]
        %v277 = vld.sshfl [vmem:[#allocation1 + $0x8] sm:$0xff pattern:$0x75316420]
        %280 = vrot.lane.b32.xlu0 %v276, 127
        %v281 = vpop.permute.xlu0 %280
        %282 = vrot.lane.b32.xlu0 %v277, 127
        %v283 = vpop.permute.xlu0 %282
        %v284 = vlaneseq
        %v285 = vand.u32 %v284, 127
        %vm286 = vcmp.lt.s32.totalorder %v285, 127
        %v287 = vsel %vm286, %v281, %v283
        %v288 = vsel %vm286, %v283, %v281
        %289 = vst [vmem:[#allocation1] ss:$2 sm:$0xff] %v268
        %v290 = vld.sshfl [vmem:[#allocation1] sm:$0xff pattern:$0x75316420]
        %v291 = vld.sshfl [vmem:[#allocation1 + $0x8] sm:$0xff pattern:$0x75316420]
        %v294 = vsub.f32 %v287, %v290
        %v295 = vsub.f32 %v288, %v291
        %v296 = vld [vmem:[#allocation2] sm:$0xff]
        %v297 = vmul.f32 %v294, %v294
        %v298 = vmul.f32 %v295, %v295
        %v299 = vld [vmem:[#allocation4] ss:$2 sm:$0x3]
        %v301 = vperm.slane %v299, 0
        %v302 = vperm.slane %v299, 1
        %v305 = vmul.f32 %v297, %v301
        %v306 = vmul.f32 %v298, %v302
        %v309 = vrot.slane %v306, 4
        %vm310 = vcmask 1043456
        %v311 = vsel %vm310, %v305, %v309
        %v313 = vadd.f32 %v296, %v311
        %314 = vst [vmem:[#allocation2] sm:$0xff] %v313
        %315 = vst [vmem:[#allocation1] ss:$2 sm:$0xff] %v268
        %v316 = vld.sshfl [vmem:[#allocation1] sm:$0xff pattern:$0x75316420]
        %v317 = vld.sshfl [vmem:[#allocation1 + $0x8] sm:$0xff pattern:$0x75316420]
        %320 = vrot.lane.b32.xlu0 %v316, 112
        %v321 = vpop.permute.xlu0 %320
        %322 = vrot.lane.b32.xlu0 %v317, 112
        %v323 = vpop.permute.xlu0 %322
        %vm324 = vcmp.lt.s32.totalorder %v285, 112
        %v325 = vsel %vm324, %v321, %v323
        %v326 = vsel %vm324, %v323, %v321
        %327 = vst [vmem:[#allocation1] ss:$2 sm:$0xff] %v268
        %v328 = vld.sshfl [vmem:[#allocation1] sm:$0xff pattern:$0x75316420]
        %v329 = vld.sshfl [vmem:[#allocation1 + $0x8] sm:$0xff pattern:$0x75316420]
        %v332 = vsub.f32 %v325, %v328
        %v333 = vsub.f32 %v326, %v329
        %v334 = vld [vmem:[#allocation2] sm:$0xff]
        %v335 = vmul.f32 %v332, %v332
        %v336 = vmul.f32 %v333, %v333
        %s337 = scalar_lea.vmem [#allocation4], 1
        %v338 = vld [vmem:[%s337] ss:$2 sm:$0x3]
        %v340 = vperm.slane %v338, 0
        %v341 = vperm.slane %v338, 1
        %v344 = vmul.f32 %v335, %v340
        %v345 = vmul.f32 %v336, %v341
        %v348 = vrot.slane %v345, 4
        %v349 = vsel %vm310, %v344, %v348
        %v351 = vadd.f32 %v334, %v349
        %352 = vst [vmem:[#allocation2] sm:$0xff] %v351
        %v353 = vrot.slane %v268, 7
        %v355 = vsub.f32 %v268, %v353
        %v356 = vld [vmem:[#allocation2] sm:$0x77]
        %v357 = vmul.f32 %v355, %v355
        %v358 = vmul.f32 %v357, 0.0006510417
        %v360 = vrot.slane %v358, 5
        %v361 = vrot.slane %v360, 4
        %v363 = vadd.f32 %v356, %v361
        %364 = vst [vmem:[#allocation2] sm:$0x77] %v363
        // Predicated region
        $region49: #{tpu_custom_call.1} parent=31 // pred_check
          %p365 = pneg %p261
        $region50: #{tpu_custom_call.1} parent=31 // pred_check_branch
          %367 = sbr.rel (%p365) target = $region52
        $region51: #{tpu_custom_call.1} parent=31 // pred_region
          %v368 = vld [vmem:[#allocation2] sm:$0xff]
          %370 = vst [vmem:[#allocation1] ss:$2 sm:$0xff] %v368
          %v371 = vld.sshfl [vmem:[#allocation1] sm:$0xff pattern:$0x75316420]
          %v372 = vld.sshfl [vmem:[#allocation1 + $0x8] sm:$0xff pattern:$0x75316420]
          %v375 = vsel %vm310, %v371, 0.0
          %v376 = vrot.slane %v375, 4
          %v377 = vadd.f32 %v375, %v376
          %v378 = vrot.slane %v377, 2
          %v379 = vadd.f32 %v377, %v378
          %v380 = vrot.slane %v379, 1
          %v381 = vadd.f32 %v379, %v380
          %v382 = vsel %vm310, %v372, 0.0
          %v383 = vrot.slane %v382, 4
          %v384 = vadd.f32 %v382, %v383
          %v385 = vrot.slane %v384, 2
          %v386 = vadd.f32 %v384, %v385
          %v387 = vrot.slane %v386, 1
          %v388 = vadd.f32 %v386, %v387
          %v391 = vrot.slane %v388, 7
          %vm392 = vcmask 1040384
          %v393 = vsel %vm392, %v381, %v391
          %v395 = vlaneseq
          %vm396 = vcmp.ge.s32.totalorder %v395, 0
          %vm397 = vcmp.lt.s32.totalorder %v395, 256
          %vm398 = vmand %vm396, %vm397
          %399 = vst.msk [vmem:[%s260] sm:$0x3] %vm398, %v393
        $region52: #{tpu_custom_call.1} parent=31 // pred_fallthru
          _
        %s400 = sand.u32 %s118, 1
        %s401 = scalar_lea.sflag [#allocation6], %s400
        %s402 = sand.u32 %s118, 1
        %s403 = smul.addr %s402, 2
        %s404 = scalar_lea.vmem [#allocation10], %s403
        // Predicated region
        $region53: #{tpu_custom_call.1} parent=31 // pred_check
          %p405 = pneg %p128
        $region54: #{tpu_custom_call.1} parent=31 // pred_check_branch
          %407 = sbr.rel (%p405) target = $region56
        $region55: #{tpu_custom_call.1} parent=31 // pred_region
          %409 = vsyncadd %s401, 0
          %s410 = smul.addr %s25, 2
          %s411 = scalar_lea.hbm %s3, %s410
          %s413 = sshll.u32 %s404, 4
          %s414 = int_to_ptr.vmem [resolvable:$true] %s413
          %s415 = sshll.u32 %s411, 4
          %s416 = int_to_ptr.hbm [resolvable:$true] %s415
          %418 = dma.vmem_to_hbm [thread:$0]  %s414, 32, %s416, %s401
        $region56: #{tpu_custom_call.1} parent=31 // pred_fallthru
          _
      $region32: #{tpu_custom_call.1} parent=5 // pred_fallthru
        _
      %p419 = scmp.le.s32.totalorder 2, %s16
      // Predicated region
      $region57: #{tpu_custom_call.1} parent=5 // pred_check
        %p420 = pneg %p419
      $region58: #{tpu_custom_call.1} parent=5 // pred_check_branch
        %422 = sbr.rel (%p420) target = $region60
      $region59: #{tpu_custom_call.1} parent=5 // pred_region
        %s423 = ssub.s32 %s16, 2
        // Predicated region
        $region61: #{tpu_custom_call.1} parent=59 // pred_check
          %p424 = pneg %p134
        $region62: #{tpu_custom_call.1} parent=59 // pred_check_branch
          %426 = sbr.rel (%p424) target = $region64
        $region63: #{tpu_custom_call.1} parent=59 // pred_region
          %s427 = sand.u32 %s119, 1
          %s428 = scalar_lea.sflag [#allocation6], %s427
          %s429 = sand.u32 %s119, 1
          %s430 = smul.addr %s429, 2
          %s431 = scalar_lea.vmem [#allocation10], %s430
          %433 = dma.done %s428, 32
        $region64: #{tpu_custom_call.1} parent=59 // pred_fallthru
          _
      $region60: #{tpu_custom_call.1} parent=5 // pred_fallthru
        _
    $region6: #{tpu_custom_call.1} parent=1 // loop_footer
      %s20 = sadd.s32 1, %s16
    $region7: #{tpu_custom_call.1} parent=1 // loop_footer_branch
      %15 = sbr.rel target = $region3
    $region8: #{tpu_custom_call.1} parent=1 // loop_exit
      _
    %434 = vsyncpa [#allocation5], 1
    %s435 = scalar_lea.sflag [#allocation5], 1
    %436 = vsyncpa %s435, 1
    %437 = vsyncpa [#allocation8], 1
    %s438 = scalar_lea.sflag [#allocation8], 1
    %439 = vsyncpa %s438, 1
    %440 = vsyncpa [#allocation6], 1
    %s441 = scalar_lea.sflag [#allocation6], 1
    %442 = vsyncpa %s441, 1

</llo_original>
